<compile_context>
chip_gen: v7x
topology: tpu7x:2x2x1
jax: 0.10.0
libtpu: 0.0.40
codegen_flags: <defaults>
</compile_context>

<pallas_src>
import functools

import jax
import jax.numpy as jnp
from jax.experimental import pallas as pl
from jax.experimental.pallas import tpu as pltpu


def _round_up(x, m):
    return ((x + m - 1) // m) * m


def gated_attention_kernel(h_ref, wvu_ref, bvu_ref, ww_ref, bw_ref, a_ref, *,
                           d_pad):
    """Fused tile: one (L -> 2*D_pad) projection, tanh/sigmoid gate, (D_pad -> K_pad)."""
    h = h_ref[...]                                                  # (tn, L)
    # Single wide projection covering both the V (tanh) and U (sigmoid) branches.
    proj = (jnp.dot(h, wvu_ref[...], preferred_element_type=jnp.float32)
            + bvu_ref[...])                                         # (tn, 2*D_pad)
    av = jnp.tanh(proj[:, :d_pad])                                  # (tn, D_pad)
    au = jax.nn.sigmoid(proj[:, d_pad:])                            # (tn, D_pad)
    gated = av * au                                                 # (tn, D_pad)
    # attention_weights projection, lane-dense (K zero-padded to K_pad).
    a = (jnp.dot(gated, ww_ref[...], preferred_element_type=jnp.float32)
         + bw_ref[...])                                             # (tn, K_pad)
    a_ref[...] = a.astype(a_ref.dtype)


def gated_attention_forward(x, params, *, tn=256):
    """x: (1, N, L). Returns (A: (N, K), H: (N, L)) matching the PyTorch module."""
    wv, bv, wu, bu, ww, bw = params
    h = x[0]                                     # squeeze(0): (N, L)
    n, l = h.shape
    d = wv.shape[1]
    k = ww.shape[1]

    d_pad = _round_up(d, 128)                    # lane-tile-aligned branch width
    k_pad = _round_up(k, 128)                    # lane-dense output width

    # Row tile: as large as possible up to `tn`, multiple of 8 (sublane).
    tn_eff = min(tn, _round_up(n, 8))
    n_pad = _round_up(n, tn_eff)
    grid = pl.cdiv(n_pad, tn_eff)

    # Pack the two branch weights into one (L, 2*D_pad) operand.  Zero padding
    # keeps padded lanes inert: tanh(0)=0 -> gated pad = 0, and the padded
    # rows of W_w are zero as well.
    f32 = jnp.float32
    wvu = jnp.zeros((l, 2 * d_pad), f32)
    wvu = wvu.at[:, :d].set(wv.astype(f32)).at[:, d_pad:d_pad + d].set(wu.astype(f32))
    bvu = jnp.zeros((1, 2 * d_pad), f32)
    bvu = bvu.at[:, :d].set(bv.astype(f32)).at[:, d_pad:d_pad + d].set(bu.astype(f32))
    ww_p = jnp.zeros((d_pad, k_pad), f32).at[:d, :k].set(ww.astype(f32))
    bw_p = jnp.zeros((1, k_pad), f32).at[:, :k].set(bw.astype(f32))

    h_pad = h if n_pad == n else jnp.pad(h, ((0, n_pad - n), (0, 0)))

    # Explicit VMEM budget: double-buffered H/A tiles + weights, 2x headroom,
    # clamped so it also fits v7x (64 MiB physical VMEM per TensorCore).
    per_step_bytes = 4 * (2 * tn_eff * (l + k_pad)
                          + 2 * (l * 2 * d_pad + 2 * d_pad + d_pad * k_pad + k_pad))
    vmem_limit = int(min(max(2 * per_step_bytes, 16 * 2**20), 48 * 2**20))

    a_padded = pl.pallas_call(
        functools.partial(gated_attention_kernel, d_pad=d_pad),
        out_shape=jax.ShapeDtypeStruct((n_pad, k_pad), f32),
        grid_spec=pltpu.PrefetchScalarGridSpec(
            num_scalar_prefetch=0,
            grid=(grid,),
            in_specs=[
                pl.BlockSpec((tn_eff, l), lambda i: (i, 0)),        # H row tile
                pl.BlockSpec((l, 2 * d_pad), lambda i: (0, 0)),     # [W_V | W_U]
                pl.BlockSpec((1, 2 * d_pad), lambda i: (0, 0)),     # [b_V | b_U]
                pl.BlockSpec((d_pad, k_pad), lambda i: (0, 0)),     # W_w (padded)
                pl.BlockSpec((1, k_pad), lambda i: (0, 0)),         # b_w (padded)
            ],
            out_specs=pl.BlockSpec((tn_eff, k_pad), lambda i: (i, 0)),
        ),
        compiler_params=pltpu.CompilerParams(
            dimension_semantics=("parallel",),
            vmem_limit_bytes=vmem_limit),
    )(h_pad, wvu, bvu, ww_p, bw_p)

    a = a_padded[:n, :k]                          # drop row/lane padding
    return a, h


def init_params(key, L, D, K):
    """Deterministic init: shapes mirror nn.Linear, stored transposed for the kernel."""
    k1, k2, k3, k4, k5, k6 = jax.random.split(key, 6)
    # PyTorch nn.Linear(L, D) weight is (D, L); we store its transpose (L, D).
    wv = jax.random.normal(k1, (L, D), jnp.float32) * 0.05
    bv = jax.random.normal(k2, (1, D), jnp.float32) * 0.05
    wu = jax.random.normal(k3, (L, D), jnp.float32) * 0.05
    bu = jax.random.normal(k4, (1, D), jnp.float32) * 0.05
    ww = jax.random.normal(k5, (D, K), jnp.float32) * 0.05
    bw = jax.random.normal(k6, (1, K), jnp.float32) * 0.05
    return wv, bv, wu, bu, ww, bw


def reference_forward(x, params):
    """Plain-JAX reference with identical semantics (for correctness check)."""
    wv, bv, wu, bu, ww, bw = params
    h = x[0]
    av = jnp.tanh(h @ wv + bv)
    au = jax.nn.sigmoid(h @ wu + bu)
    a = (av * au) @ ww + bw
    return a, h


if __name__ == "__main__":
    # Small but representative ABMIL shapes (module defaults: L=1024, D=128, K=4).
    # N=300 deliberately exercises cdiv padding and a 2-step "parallel" row grid.
    N, L, D, K = 300, 128, 64, 4
    key = jax.random.PRNGKey(0)
    kx, kp = jax.random.split(key)
    x = jax.random.normal(kx, (1, N, L), jnp.float32)   # (1, N, L) like PyTorch input
    params = init_params(kp, L, D, K)

    a_out, h_out = gated_attention_forward(x, params)
    a_out = jax.block_until_ready(a_out)
    h_out = jax.block_until_ready(h_out)

    a_ref, h_ref = reference_forward(x, params)
    assert a_out.shape == (N, K) and h_out.shape == (N, L)
    assert jnp.allclose(a_out, a_ref, atol=1e-4, rtol=1e-4), \
        float(jnp.max(jnp.abs(a_out - a_ref)))
    assert jnp.allclose(h_out, h_ref)

    # compute_agg (torch.mm) lives outside forward(); kept as a plain matmul.
    # Fusing it into the kernel as a (K, L) accumulator output would halve HBM
    # traffic at large N*L, but needs the row axis marked "arbitrary" (serial
    # accumulation), trading away the megacore-parallel row grid.
    _agg = a_out.T @ h_out  # (K, L)

    print("KERNEL_OK")
</pallas_src>

<mosaic_0001>
module attributes {stable_mosaic.version = 11 : i64} {
  func.func @gated_attention_kernel(%arg0: i32, %arg1: memref<256x128xf32, #tpu.memory_space<vmem>>, %arg2: memref<128x256xf32, #tpu.memory_space<vmem>>, %arg3: memref<1x256xf32, #tpu.memory_space<vmem>>, %arg4: memref<128x128xf32, #tpu.memory_space<vmem>>, %arg5: memref<1x128xf32, #tpu.memory_space<vmem>>, %arg6: memref<256x128xf32, #tpu.memory_space<vmem>>) attributes {dimension_semantics = [#tpu.dimension_semantics<parallel>], iteration_bounds = array<i64: 2>, scalar_prefetch = 0 : i64, scratch_operands = 0 : i64, tpu.core_type = #tpu.core_type<tc>, window_params = [{transform_indices = @transform_0, window_bounds = array<i64: 256, 128>}, {pipeline_mode = #tpu.pipeline_mode<synchronous>, transform_indices = @transform_1, window_bounds = array<i64: 128, 256>}, {pipeline_mode = #tpu.pipeline_mode<synchronous>, transform_indices = @transform_2, window_bounds = array<i64: 1, 256>}, {pipeline_mode = #tpu.pipeline_mode<synchronous>, transform_indices = @transform_3, window_bounds = array<i64: 128, 128>}, {pipeline_mode = #tpu.pipeline_mode<synchronous>, transform_indices = @transform_4, window_bounds = array<i64: 1, 128>}, {transform_indices = @transform_5, window_bounds = array<i64: 256, 128>}]} {
    %c0 = arith.constant 0 : index
    %c0_0 = arith.constant 0 : index
    %0 = vector.load %arg1[%c0, %c0_0] : memref<256x128xf32, #tpu.memory_space<vmem>>, vector<256x128xf32>
    %c0_1 = arith.constant 0 : index
    %c0_2 = arith.constant 0 : index
    %1 = vector.load %arg2[%c0_1, %c0_2] : memref<128x256xf32, #tpu.memory_space<vmem>>, vector<128x256xf32>
    %cst = arith.constant dense<0.000000e+00> : vector<256x256xf32>
    %2 = tpu.matmul %0, %1, %cst {dimension_numbers = #tpu.dot_dimension_numbers<[1], [0], [0], [1], [0, 0, 1, 1], [], []>} : vector<256x128xf32>, vector<128x256xf32>, vector<256x256xf32> -> vector<256x256xf32>
    %c0_3 = arith.constant 0 : index
    %c0_4 = arith.constant 0 : index
    %3 = vector.load %arg3[%c0_3, %c0_4] : memref<1x256xf32, #tpu.memory_space<vmem>>, vector<1x256xf32>
    %4 = vector.broadcast %3 : vector<1x256xf32> to vector<256x256xf32>
    %5 = arith.addf %2, %4 : vector<256x256xf32>
    %6 = vector.extract_strided_slice %5 {offsets = [0, 0], sizes = [256, 128], strides = [1, 1]} : vector<256x256xf32> to vector<256x128xf32>
    %7 = math.tanh %6 : vector<256x128xf32>
    %8 = vector.extract_strided_slice %5 {offsets = [0, 128], sizes = [256, 128], strides = [1, 1]} : vector<256x256xf32> to vector<256x128xf32>
    %9 = arith.negf %8 : vector<256x128xf32>
    %10 = math.exp %9 : vector<256x128xf32>
    %cst_5 = arith.constant 1.000000e+00 : f32
    %11 = vector.broadcast %cst_5 : f32 to vector<256x128xf32>
    %12 = arith.addf %11, %10 : vector<256x128xf32>
    %13 = arith.divf %11, %12 : vector<256x128xf32>
    %14 = arith.mulf %7, %13 : vector<256x128xf32>
    %c0_6 = arith.constant 0 : index
    %c0_7 = arith.constant 0 : index
    %15 = vector.load %arg4[%c0_6, %c0_7] : memref<128x128xf32, #tpu.memory_space<vmem>>, vector<128x128xf32>
    %cst_8 = arith.constant dense<0.000000e+00> : vector<256x128xf32>
    %16 = tpu.matmul %14, %15, %cst_8 {dimension_numbers = #tpu.dot_dimension_numbers<[1], [0], [0], [1], [0, 0, 1, 1], [], []>} : vector<256x128xf32>, vector<128x128xf32>, vector<256x128xf32> -> vector<256x128xf32>
    %c0_9 = arith.constant 0 : index
    %c0_10 = arith.constant 0 : index
    %17 = vector.load %arg5[%c0_9, %c0_10] : memref<1x128xf32, #tpu.memory_space<vmem>>, vector<1x128xf32>
    %18 = vector.broadcast %17 : vector<1x128xf32> to vector<256x128xf32>
    %19 = arith.addf %16, %18 : vector<256x128xf32>
    %c0_11 = arith.constant 0 : index
    %c0_12 = arith.constant 0 : index
    %20 = vector.load %arg6[%c0_11, %c0_12] : memref<256x128xf32, #tpu.memory_space<vmem>>, vector<256x128xf32>
    tpu.vector_store %arg6[%c0_11, %c0_12], %19 {strides = array<i32>} : memref<256x128xf32, #tpu.memory_space<vmem>>, vector<256x128xf32>,
    return
  }
  func.func @transform_0(%arg0: i32) -> (i32, i32) {
    %c0_i32 = arith.constant 0 : i32
    %c0_i32_0 = arith.constant 0 : i32
    return %arg0, %c0_i32 : i32, i32
  }
  func.func @transform_1(%arg0: i32) -> (i32, i32) {
    %c0_i32 = arith.constant 0 : i32
    %c0_i32_0 = arith.constant 0 : i32
    %c0_i32_1 = arith.constant 0 : i32
    return %c0_i32, %c0_i32_0 : i32, i32
  }
  func.func @transform_2(%arg0: i32) -> (i32, i32) {
    %c0_i32 = arith.constant 0 : i32
    %c0_i32_0 = arith.constant 0 : i32
    %c0_i32_1 = arith.constant 0 : i32
    return %c0_i32, %c0_i32_0 : i32, i32
  }
  func.func @transform_3(%arg0: i32) -> (i32, i32) {
    %c0_i32 = arith.constant 0 : i32
    %c0_i32_0 = arith.constant 0 : i32
    %c0_i32_1 = arith.constant 0 : i32
    return %c0_i32, %c0_i32_0 : i32, i32
  }
  func.func @transform_4(%arg0: i32) -> (i32, i32) {
    %c0_i32 = arith.constant 0 : i32
    %c0_i32_0 = arith.constant 0 : i32
    %c0_i32_1 = arith.constant 0 : i32
    return %c0_i32, %c0_i32_0 : i32, i32
  }
  func.func @transform_5(%arg0: i32) -> (i32, i32) {
    %c0_i32 = arith.constant 0 : i32
    %c0_i32_0 = arith.constant 0 : i32
    return %arg0, %c0_i32 : i32, i32
  }
}

</mosaic_0001>

<llo_original>
// kernel: tpu_custom_call.1
$region0: #{tpu_custom_call.1}
  #allocation0 [shape = 'u32[]', space=smem, size = 0x4, offset = 0x4, fixed_abs, tag = 'smem constant byte address 0x4 - core index']
  #allocation1 [shape = 'u32[144,128]{1,0:T(1,128)}', space=vmem, size = 0x12000, scoped, tag = 'internal scratch']
  %s0 = inlined_call_operand.hbm [shape: f32[512,128], index: 0, kind: input, shape index: {}]
  %s1 = inlined_call_operand.hbm [shape: f32[128,256], index: 1, kind: input, shape index: {}]
  %s2 = inlined_call_operand.vmem [shape: f32[1,256], index: 2, kind: input, shape index: {}]
  %s3 = inlined_call_operand.hbm [shape: f32[128,128], index: 3, kind: input, shape index: {}]
  %s4 = inlined_call_operand.vmem [shape: f32[1,128], index: 4, kind: input, shape index: {}]
  %s5 = inlined_call_operand.hbm [shape: f32[512,128], index: 5, kind: output, shape index: {}]
  %s6 = sld [smem:[#allocation0]]
  $region65: #{tpu_custom_call.1} parent=0
    _
  %s8 = ssub.s32 1, %s6
  %s9 = scalar_select 0, %s8, %s6
  $region1: #{tpu_custom_call.1} parent=0
    #allocation2 [shape = 'u8[262144]{0}', space=vmem, size = 0x40000, scoped, tag = 'input window, operand 0']
    #allocation3 [shape = 's32[2]{0}', space=sflag, size = 0x8, scoped, tag = 'scoped memory for tpu_custom_call.1']
    #allocation4 [shape = 's32[2]{0}', space=sflag, size = 0x8, scoped, tag = 'scoped memory for tpu_custom_call.1']
    #allocation5 [shape = 'u8[131072]{0}', space=vmem, size = 0x20000, scoped, tag = 'input window, operand 1, single buffered']
    #allocation6 [shape = 's32[1]{0}', space=sflag, size = 0x4, scoped, tag = 'scoped memory for tpu_custom_call.1']
    #allocation7 [shape = 'u8[65536]{0}', space=vmem, size = 0x10000, scoped, tag = 'input window, operand 3, single buffered']
    #allocation8 [shape = 'u8[262144]{0}', space=vmem, size = 0x40000, scoped, tag = 'output window, operand 0']
    %10 = vsyncpa [#allocation3], 0
    %s11 = scalar_lea.sflag [#allocation3], 1
    %12 = vsyncpa %s11, 0
    %13 = vsyncpa [#allocation6], 0
    %14 = vsyncpa [#allocation4], 0
    %s15 = scalar_lea.sflag [#allocation4], 1
    %16 = vsyncpa %s15, 0
    loop: start=0, step=1, limit=4
    $region2: #{tpu_custom_call.1} parent=1 // loop_pre_header
      _
    $region3: #{tpu_custom_call.1} parent=1 // loop_header
      %s18 = sphi 0, %s22
      %p19 = scmp.ge.s32.totalorder %s18, 4
      %s28 = sphi 0, %s30
      %s31 = sphi 0, %s28
      %s32 = sphi 0, %s31
      %s48 = sphi 0, %s32
      %s52 = sphi 0, %s52
      %s54 = sphi 0, %s52
      %s55 = sphi 0, %s54
      %s69 = sphi 0, %s55
      %s73 = sphi 0, %s73
      %s75 = sphi 0, %s73
      %s76 = sphi 0, %s75
      %s90 = sphi 0, %s76
      %s94 = sphi 0, %s94
      %s96 = sphi 0, %s94
      %s97 = sphi 0, %s96
      %s111 = sphi 0, %s97
      %s115 = sphi 0, %s115
      %s117 = sphi 0, %s115
      %s118 = sphi 0, %s117
      %s132 = sphi 0, %s118
      %s138 = sphi 0, %s140
      %s141 = sphi 0, %s138
      %s142 = sphi 0, %s141
      %s158 = sphi 0, %s142
    $region4: #{tpu_custom_call.1} parent=1 // loop_header_branch
      %21 = sbr.rel (%p19) target = $region8
    $region5: #{tpu_custom_call.1} parent=1 // loop_body
      %s23 = ssub.s32 %s18, 1
      %s24 = ssub.s32 %s18, 2
      %s25 = sadd.s32 %s18, 1
      %s26 = ssub.s32 %s18, %s25
      %p27 = scmp.eq.s32.totalorder %s26, 0
      %s29 = sadd.s32 %s28, 1
      %s30 = scalar_select %p27, %s28, %s29
      %p33 = pneg %p27
      %p34 = scmp.eq.s32.totalorder %s18, 1
      %p35 = por %p33, %p34
      %p36 = scmp.ne.s32.totalorder %s28, %s31
      %p37 = scmp.eq.s32.totalorder %s18, 0
      %p38 = por %p36, %p37
      %p39 = scmp.ne.s32.totalorder %s28, %s31
      %p40 = scmp.eq.s32.totalorder %s23, 1
      %p41 = por %p39, %p40
      %p42 = scmp.ne.s32.totalorder %s31, %s32
      %p43 = scmp.eq.s32.totalorder %s23, 0
      %p44 = por %p42, %p43
      %p45 = scmp.ne.s32.totalorder %s31, %s32
      %p46 = scmp.eq.s32.totalorder %s24, 1
      %p47 = por %p45, %p46
      %p49 = scmp.ne.s32.totalorder %s32, %s48
      %p50 = scmp.eq.s32.totalorder %s24, 0
      %p51 = por %p49, %p50
      %s53 = sadd.s32 %s52, 1
      %p56 = scmp.eq.s32.totalorder %s18, 1
      %p57 = scmp.ne.s32.totalorder %s52, %s54
      %p58 = scmp.eq.s32.totalorder %s18, 0
      %p59 = por %p57, %p58
      %p60 = scmp.ne.s32.totalorder %s52, %s54
      %p61 = scmp.eq.s32.totalorder %s23, 1
      %p62 = por %p60, %p61
      %p63 = scmp.ne.s32.totalorder %s54, %s55
      %p64 = scmp.eq.s32.totalorder %s23, 0
      %p65 = por %p63, %p64
      %p66 = scmp.ne.s32.totalorder %s54, %s55
      %p67 = scmp.eq.s32.totalorder %s24, 1
      %p68 = por %p66, %p67
      %p70 = scmp.ne.s32.totalorder %s55, %s69
      %p71 = scmp.eq.s32.totalorder %s24, 0
      %p72 = por %p70, %p71
      %s74 = sadd.s32 %s73, 1
      %p77 = scmp.eq.s32.totalorder %s18, 1
      %p78 = scmp.ne.s32.totalorder %s73, %s75
      %p79 = scmp.eq.s32.totalorder %s18, 0
      %p80 = por %p78, %p79
      %p81 = scmp.ne.s32.totalorder %s73, %s75
      %p82 = scmp.eq.s32.totalorder %s23, 1
      %p83 = por %p81, %p82
      %p84 = scmp.ne.s32.totalorder %s75, %s76
      %p85 = scmp.eq.s32.totalorder %s23, 0
      %p86 = por %p84, %p85
      %p87 = scmp.ne.s32.totalorder %s75, %s76
      %p88 = scmp.eq.s32.totalorder %s24, 1
      %p89 = por %p87, %p88
      %p91 = scmp.ne.s32.totalorder %s76, %s90
      %p92 = scmp.eq.s32.totalorder %s24, 0
      %p93 = por %p91, %p92
      %s95 = sadd.s32 %s94, 1
      %p98 = scmp.eq.s32.totalorder %s18, 1
      %p99 = scmp.ne.s32.totalorder %s94, %s96
      %p100 = scmp.eq.s32.totalorder %s18, 0
      %p101 = por %p99, %p100
      %p102 = scmp.ne.s32.totalorder %s94, %s96
      %p103 = scmp.eq.s32.totalorder %s23, 1
      %p104 = por %p102, %p103
      %p105 = scmp.ne.s32.totalorder %s96, %s97
      %p106 = scmp.eq.s32.totalorder %s23, 0
      %p107 = por %p105, %p106
      %p108 = scmp.ne.s32.totalorder %s96, %s97
      %p109 = scmp.eq.s32.totalorder %s24, 1
      %p110 = por %p108, %p109
      %p112 = scmp.ne.s32.totalorder %s97, %s111
      %p113 = scmp.eq.s32.totalorder %s24, 0
      %p114 = por %p112, %p113
      %s116 = sadd.s32 %s115, 1
      %p119 = scmp.eq.s32.totalorder %s18, 1
      %p120 = scmp.ne.s32.totalorder %s115, %s117
      %p121 = scmp.eq.s32.totalorder %s18, 0
      %p122 = por %p120, %p121
      %p123 = scmp.ne.s32.totalorder %s115, %s117
      %p124 = scmp.eq.s32.totalorder %s23, 1
      %p125 = por %p123, %p124
      %p126 = scmp.ne.s32.totalorder %s117, %s118
      %p127 = scmp.eq.s32.totalorder %s23, 0
      %p128 = por %p126, %p127
      %p129 = scmp.ne.s32.totalorder %s117, %s118
      %p130 = scmp.eq.s32.totalorder %s24, 1
      %p131 = por %p129, %p130
      %p133 = scmp.ne.s32.totalorder %s118, %s132
      %p134 = scmp.eq.s32.totalorder %s24, 0
      %p135 = por %p133, %p134
      %s136 = ssub.s32 %s18, %s25
      %p137 = scmp.eq.s32.totalorder %s136, 0
      %s139 = sadd.s32 %s138, 1
      %s140 = scalar_select %p137, %s138, %s139
      %p143 = pneg %p137
      %p144 = scmp.eq.s32.totalorder %s18, 1
      %p145 = por %p143, %p144
      %p146 = scmp.ne.s32.totalorder %s138, %s141
      %p147 = scmp.eq.s32.totalorder %s18, 0
      %p148 = por %p146, %p147
      %p149 = scmp.ne.s32.totalorder %s138, %s141
      %p150 = scmp.eq.s32.totalorder %s23, 1
      %p151 = por %p149, %p150
      %p152 = scmp.ne.s32.totalorder %s141, %s142
      %p153 = scmp.eq.s32.totalorder %s23, 0
      %p154 = por %p152, %p153
      %p155 = scmp.ne.s32.totalorder %s141, %s142
      %p156 = scmp.eq.s32.totalorder %s24, 1
      %p157 = por %p155, %p156
      %p159 = scmp.ne.s32.totalorder %s142, %s158
      %p160 = scmp.eq.s32.totalorder %s24, 0
      %p161 = por %p159, %p160
      %p162 = scmp.le.s32.totalorder 1, %s18
      %p163 = scmp.lt.s32.totalorder %s18, 3
      %p164 = pnand %p162, %p163
      %p165 = pneg %p164
      // Predicated region
      $region9: #{tpu_custom_call.1} parent=5 // pred_check
        _
      $region10: #{tpu_custom_call.1} parent=5 // pred_check_branch
        %167 = sbr.rel (%p164) target = $region12
      $region11: #{tpu_custom_call.1} parent=5 // pred_region
        %s168 = ssub.s32 %s18, 1
        // Predicated region
        $region13: #{tpu_custom_call.1} parent=11 // pred_check
          %p169 = pneg %p65
        $region14: #{tpu_custom_call.1} parent=11 // pred_check_branch
          %171 = sbr.rel (%p169) target = $region16
        $region15: #{tpu_custom_call.1} parent=11 // pred_region
          %s173 = ssub.s32 4096, 4096
          %174 = vsyncadd [#allocation6], %s173
          %s175 = sshll.u32 [#allocation5], 4
          %s176 = int_to_ptr.vmem [resolvable:$true] %s175
          %181 = dma.hbm_to_vmem [thread:$0]  %s1, 4096, %s176, [#allocation6], 256, 256, 16
        $region16: #{tpu_custom_call.1} parent=11 // pred_fallthru
          _
        // Predicated region
        $region17: #{tpu_custom_call.1} parent=11 // pred_check
          %p182 = pneg %p86
        $region18: #{tpu_custom_call.1} parent=11 // pred_check_branch
          %184 = sbr.rel (%p182) target = $region20
        $region19: #{tpu_custom_call.1} parent=11 // pred_region
          _
        $region20: #{tpu_custom_call.1} parent=11 // pred_fallthru
          _
        // Predicated region
        $region21: #{tpu_custom_call.1} parent=11 // pred_check
          %p185 = pneg %p107
        $region22: #{tpu_custom_call.1} parent=11 // pred_check_branch
          %187 = sbr.rel (%p185) target = $region24
        $region23: #{tpu_custom_call.1} parent=11 // pred_region
          %s189 = ssub.s32 2048, 2048
          %190 = vsyncadd [#allocation6], %s189
          %s191 = sshll.u32 [#allocation7], 4
          %s192 = int_to_ptr.vmem [resolvable:$true] %s191
          %197 = dma.hbm_to_vmem [thread:$0]  %s3, 2048, %s192, [#allocation6], 128, 128, 8
        $region24: #{tpu_custom_call.1} parent=11 // pred_fallthru
          _
        // Predicated region
        $region25: #{tpu_custom_call.1} parent=11 // pred_check
          %p198 = pneg %p128
        $region26: #{tpu_custom_call.1} parent=11 // pred_check_branch
          %200 = sbr.rel (%p198) target = $region28
        $region27: #{tpu_custom_call.1} parent=11 // pred_region
          _
        $region28: #{tpu_custom_call.1} parent=11 // pred_fallthru
          _
      $region12: #{tpu_custom_call.1} parent=5 // pred_fallthru
        _
      %p201 = scmp.lt.s32.totalorder %s18, 2
      // Predicated region
      $region29: #{tpu_custom_call.1} parent=5 // pred_check
        %p202 = pneg %p201
      $region30: #{tpu_custom_call.1} parent=5 // pred_check_branch
        %204 = sbr.rel (%p202) target = $region32
      $region31: #{tpu_custom_call.1} parent=5 // pred_region
        // Predicated region
        $region33: #{tpu_custom_call.1} parent=31 // pred_check
          %p205 = pneg %p38
        $region34: #{tpu_custom_call.1} parent=31 // pred_check_branch
          %207 = sbr.rel (%p205) target = $region36
        $region35: #{tpu_custom_call.1} parent=31 // pred_region
          %s208 = sand.u32 %s28, 1
          %s209 = scalar_lea.sflag [#allocation3], %s208
          %s210 = sand.u32 %s28, 1
          %s211 = smul.addr %s210, 256
          %s212 = scalar_lea.vmem [#allocation2], %s211
          %s213 = smul.u32 32, %s18
          %s215 = ssub.s32 4096, 4096
          %216 = vsyncadd %s209, %s215
          %s217 = smul.addr %s213, 128
          %s218 = scalar_lea.hbm %s0, %s217
          %s219 = sshll.u32 %s212, 4
          %s220 = int_to_ptr.vmem [resolvable:$true] %s219
          %225 = dma.hbm_to_vmem [thread:$0]  %s218, 4096, %s220, %s209, 128, 128, 8
        $region36: #{tpu_custom_call.1} parent=31 // pred_fallthru
          _
      $region32: #{tpu_custom_call.1} parent=5 // pred_fallthru
        _
      %p226 = scmp.le.s32.totalorder 1, %s18
      %p227 = scmp.lt.s32.totalorder %s18, 3
      %p228 = pnand %p226, %p227
      %p229 = pneg %p228
      // Predicated region
      $region37: #{tpu_custom_call.1} parent=5 // pred_check
        _
      $region38: #{tpu_custom_call.1} parent=5 // pred_check_branch
        %231 = sbr.rel (%p228) target = $region40
      $region39: #{tpu_custom_call.1} parent=5 // pred_region
        %s232 = ssub.s32 %s18, 1
        %s233 = sand.u32 %s31, 1
        %s234 = scalar_lea.sflag [#allocation3], %s233
        %s235 = sand.u32 %s31, 1
        %s236 = smul.addr %s235, 256
        %s237 = scalar_lea.vmem [#allocation2], %s236
        // Predicated region
        $region41: #{tpu_custom_call.1} parent=39 // pred_check
          %p238 = pneg %p44
        $region42: #{tpu_custom_call.1} parent=39 // pred_check_branch
          %240 = sbr.rel (%p238) target = $region44
        $region43: #{tpu_custom_call.1} parent=39 // pred_region
          %241 = dma.done %s234, 4096
        $region44: #{tpu_custom_call.1} parent=39 // pred_fallthru
          _
        // Predicated region
        $region45: #{tpu_custom_call.1} parent=39 // pred_check
          %p242 = pneg %p65
        $region46: #{tpu_custom_call.1} parent=39 // pred_check_branch
          %244 = sbr.rel (%p242) target = $region48
        $region47: #{tpu_custom_call.1} parent=39 // pred_region
          %245 = dma.done [#allocation6], 4096
        $region48: #{tpu_custom_call.1} parent=39 // pred_fallthru
          _
        // Predicated region
        $region49: #{tpu_custom_call.1} parent=39 // pred_check
          %p246 = pneg %p107
        $region50: #{tpu_custom_call.1} parent=39 // pred_check_branch
          %248 = sbr.rel (%p246) target = $region52
        $region51: #{tpu_custom_call.1} parent=39 // pred_region
          %249 = dma.done [#allocation6], 2048
        $region52: #{tpu_custom_call.1} parent=39 // pred_fallthru
          _
        %s250 = sand.u32 %s31, 1
        %s251 = scalar_lea.sflag [#allocation3], %s250
        %s252 = sand.u32 %s31, 1
        %s253 = smul.addr %s252, 256
        %s254 = scalar_lea.vmem [#allocation2], %s253
        %p255 = pneg %p44
        %p256 = pneg %p41
        %p257 = pneg %p65
        %p258 = pneg %p62
        %p259 = pneg %p86
        %p260 = pneg %p83
        %p261 = pneg %p107
        %p262 = pneg %p104
        %p263 = pneg %p128
        %p264 = pneg %p125
        %p265 = pneg %p154
        %p266 = pneg %p151
        %s267 = sand.u32 %s141, 1
        %s268 = scalar_lea.sflag [#allocation4], %s267
        %s269 = sand.u32 %s141, 1
        %s270 = smul.addr %s269, 256
        %s271 = scalar_lea.vmem [#allocation8], %s270
        %s272 = smul.u32 32, %s23
        %s273 = smul.u32 32, %s23
        %v274 = vld [vmem:[%s237] sm:$0xff]
        %v275 = vld [vmem:[%s237 + $0x8] sm:$0xff]
        %v276 = vld [vmem:[%s237 + $0x10] sm:$0xff]
        %v277 = vld [vmem:[%s237 + $0x18] sm:$0xff]
        %v278 = vld [vmem:[%s237 + $0x20] sm:$0xff]
        %v279 = vld [vmem:[%s237 + $0x28] sm:$0xff]
        %v280 = vld [vmem:[%s237 + $0x30] sm:$0xff]
        %v281 = vld [vmem:[%s237 + $0x38] sm:$0xff]
        %v282 = vld [vmem:[%s237 + $0x40] sm:$0xff]
        %v283 = vld [vmem:[%s237 + $0x48] sm:$0xff]
        %v284 = vld [vmem:[%s237 + $0x50] sm:$0xff]
        %v285 = vld [vmem:[%s237 + $0x58] sm:$0xff]
        %v286 = vld [vmem:[%s237 + $0x60] sm:$0xff]
        %v287 = vld [vmem:[%s237 + $0x68] sm:$0xff]
        %v288 = vld [vmem:[%s237 + $0x70] sm:$0xff]
        %v289 = vld [vmem:[%s237 + $0x78] sm:$0xff]
        %v290 = vld [vmem:[%s237 + $0x80] sm:$0xff]
        %v291 = vld [vmem:[%s237 + $0x88] sm:$0xff]
        %v292 = vld [vmem:[%s237 + $0x90] sm:$0xff]
        %v293 = vld [vmem:[%s237 + $0x98] sm:$0xff]
        %v294 = vld [vmem:[%s237 + $0xa0] sm:$0xff]
        %v295 = vld [vmem:[%s237 + $0xa8] sm:$0xff]
        %v296 = vld [vmem:[%s237 + $0xb0] sm:$0xff]
        %v297 = vld [vmem:[%s237 + $0xb8] sm:$0xff]
        %v298 = vld [vmem:[%s237 + $0xc0] sm:$0xff]
        %v299 = vld [vmem:[%s237 + $0xc8] sm:$0xff]
        %v300 = vld [vmem:[%s237 + $0xd0] sm:$0xff]
        %v301 = vld [vmem:[%s237 + $0xd8] sm:$0xff]
        %v302 = vld [vmem:[%s237 + $0xe0] sm:$0xff]
        %v303 = vld [vmem:[%s237 + $0xe8] sm:$0xff]
        %v304 = vld [vmem:[%s237 + $0xf0] sm:$0xff]
        %v305 = vld [vmem:[%s237 + $0xf8] sm:$0xff]
        %v306 = vld [vmem:[#allocation5] sm:$0xff]
        %v307 = vld [vmem:[#allocation5 + $0x8] sm:$0xff]
        %v308 = vld [vmem:[#allocation5 + $0x10] sm:$0xff]
        %v309 = vld [vmem:[#allocation5 + $0x18] sm:$0xff]
        %v310 = vld [vmem:[#allocation5 + $0x20] sm:$0xff]
        %v311 = vld [vmem:[#allocation5 + $0x28] sm:$0xff]
        %v312 = vld [vmem:[#allocation5 + $0x30] sm:$0xff]
        %v313 = vld [vmem:[#allocation5 + $0x38] sm:$0xff]
        %v314 = vld [vmem:[#allocation5 + $0x40] sm:$0xff]
        %v315 = vld [vmem:[#allocation5 + $0x48] sm:$0xff]
        %v316 = vld [vmem:[#allocation5 + $0x50] sm:$0xff]
        %v317 = vld [vmem:[#allocation5 + $0x58] sm:$0xff]
        %v318 = vld [vmem:[#allocation5 + $0x60] sm:$0xff]
        %v319 = vld [vmem:[#allocation5 + $0x68] sm:$0xff]
        %v320 = vld [vmem:[#allocation5 + $0x70] sm:$0xff]
        %v321 = vld [vmem:[#allocation5 + $0x78] sm:$0xff]
        %v322 = vld [vmem:[#allocation5 + $0x80] sm:$0xff]
        %v323 = vld [vmem:[#allocation5 + $0x88] sm:$0xff]
        %v324 = vld [vmem:[#allocation5 + $0x90] sm:$0xff]
        %v325 = vld [vmem:[#allocation5 + $0x98] sm:$0xff]
        %v326 = vld [vmem:[#allocation5 + $0xa0] sm:$0xff]
        %v327 = vld [vmem:[#allocation5 + $0xa8] sm:$0xff]
        %v328 = vld [vmem:[#allocation5 + $0xb0] sm:$0xff]
        %v329 = vld [vmem:[#allocation5 + $0xb8] sm:$0xff]
        %v330 = vld [vmem:[#allocation5 + $0xc0] sm:$0xff]
        %v331 = vld [vmem:[#allocation5 + $0xc8] sm:$0xff]
        %v332 = vld [vmem:[#allocation5 + $0xd0] sm:$0xff]
        %v333 = vld [vmem:[#allocation5 + $0xd8] sm:$0xff]
        %v334 = vld [vmem:[#allocation5 + $0xe0] sm:$0xff]
        %v335 = vld [vmem:[#allocation5 + $0xe8] sm:$0xff]
        %v336 = vld [vmem:[#allocation5 + $0xf0] sm:$0xff]
        %v337 = vld [vmem:[#allocation5 + $0xf8] sm:$0xff]
        %v338 = vld [vmem:[%s2] sm:$0x3]
        %v340 = vlaneseq
        %v341 = vshrl.u32 %v340, 7
        %v342 = vsub.s32 0, %v341
        %v343 = vrot.slane %v338, %v342
        %v344 = vlaneseq
        %v345 = vshrl.u32 %v344, 7
        %v346 = vsub.s32 1, %v345
        %v347 = vrot.slane %v338, %v346
        %350 = vmatprep.subr.mxu0 %v307
        %351 = vmatpush1.msra.mxu0 %v306
        %352 = vmatprep.subr.mxu0 %v309
        %353 = vmatpush1.msra.mxu0 %v308
        %354 = vmatprep.subr.mxu0 %v311
        %355 = vmatpush1.msra.mxu0 %v310
        %356 = vmatprep.subr.mxu0 %v313
        %357 = vmatpush1.msra.mxu0 %v312
        %358 = vmatprep.subr.mxu0 %v315
        %359 = vmatpush1.msra.mxu0 %v314
        %360 = vmatprep.subr.mxu0 %v317
        %361 = vmatpush1.msra.mxu0 %v316
        %362 = vmatprep.subr.mxu0 %v319
        %363 = vmatpush1.msra.mxu0 %v318
        %364 = vmatprep.subr.mxu0 %v321
        %365 = vmatpush1.msra.mxu0 %v320
        %366 = vmatprep.subr.mxu0 %v323
        %367 = vmatpush1.msra.mxu0 %v322
        %368 = vmatprep.subr.mxu0 %v325
        %369 = vmatpush1.msra.mxu0 %v324
        %370 = vmatprep.subr.mxu0 %v327
        %371 = vmatpush1.msra.mxu0 %v326
        %372 = vmatprep.subr.mxu0 %v329
        %373 = vmatpush1.msra.mxu0 %v328
        %374 = vmatprep.subr.mxu0 %v331
        %375 = vmatpush1.msra.mxu0 %v330
        %376 = vmatprep.subr.mxu0 %v333
        %377 = vmatpush1.msra.mxu0 %v332
        %378 = vmatprep.subr.mxu0 %v335
        %379 = vmatpush1.msra.mxu0 %v334
        %380 = vmatprep.subr.mxu0 %v337
        %381 = vmatpush1.msra.mxu0 %v336
        %382 = vmatprep.subr.mxu0 0.0
        %383 = vmatpush1.msra.mxu0 0.0
        %384 = vmatprep.subr.mxu0 0.0
        %385 = vmatpush1.msra.mxu0 0.0
        %386 = vmatprep.subr.mxu0 0.0
        %387 = vmatpush1.msra.mxu0 0.0
        %388 = vmatprep.subr.mxu0 0.0
        %389 = vmatpush1.msra.mxu0 0.0
        %390 = vmatprep.subr.mxu0 0.0
        %391 = vmatpush1.msra.mxu0 0.0
        %392 = vmatprep.subr.mxu0 0.0
        %393 = vmatpush1.msra.mxu0 0.0
        %394 = vmatprep.subr.mxu0 0.0
        %395 = vmatpush1.msra.mxu0 0.0
        %396 = vmatprep.subr.mxu0 0.0
        %397 = vmatpush1.msra.mxu0 0.0
        %398 = vmatprep.subr.mxu0 0.0
        %399 = vmatpush1.msra.mxu0 0.0
        %400 = vmatprep.subr.mxu0 0.0
        %401 = vmatpush1.msra.mxu0 0.0
        %402 = vmatprep.subr.mxu0 0.0
        %403 = vmatpush1.msra.mxu0 0.0
        %404 = vmatprep.subr.mxu0 0.0
        %405 = vmatpush1.msra.mxu0 0.0
        %406 = vmatprep.subr.mxu0 0.0
        %407 = vmatpush1.msra.mxu0 0.0
        %408 = vmatprep.subr.mxu0 0.0
        %409 = vmatpush1.msra.mxu0 0.0
        %410 = vmatprep.subr.mxu0 0.0
        %411 = vmatpush1.msra.mxu0 0.0
        %412 = vmatprep.subr.mxu0 0.0
        %413 = vmatpush1.msra.mxu0 0.0
        %414 = vmatprep.mubr.f32.mxu0 0.0
        %415 = vmatmul.mubr.f32.gmra.mrb[0].mxu0 %v274
        %v416 = vpop.f32.mrb[0].mxu0
        %v417 = vadd.f32 %v343, %v416
        %v418 = vpop.f32.mrb[0].mxu0
        %v419 = vadd.f32 %v347, %v418
        %420 = vmatprep.mubr.f32.mxu0 0.0
        %421 = vmatmul.mubr.f32.gmra.mrb[0].mxu0 %v275
        %v422 = vpop.f32.mrb[0].mxu0
        %v423 = vadd.f32 %v343, %v422
        %v424 = vpop.f32.mrb[0].mxu0
        %v425 = vadd.f32 %v347, %v424
        %426 = vmatprep.mubr.f32.mxu0 0.0
        %427 = vmatmul.mubr.f32.gmra.mrb[0].mxu0 %v276
        %v428 = vpop.f32.mrb[0].mxu0
        %v429 = vadd.f32 %v343, %v428
        %v430 = vpop.f32.mrb[0].mxu0
        %v431 = vadd.f32 %v347, %v430
        %432 = vmatprep.mubr.f32.mxu0 0.0
        %433 = vmatmul.mubr.f32.gmra.mrb[0].mxu0 %v277
        %v434 = vpop.f32.mrb[0].mxu0
        %v435 = vadd.f32 %v343, %v434
        %v436 = vpop.f32.mrb[0].mxu0
        %v437 = vadd.f32 %v347, %v436
        %438 = vmatprep.mubr.f32.mxu0 0.0
        %439 = vmatmul.mubr.f32.gmra.mrb[0].mxu0 %v278
        %v440 = vpop.f32.mrb[0].mxu0
        %v441 = vadd.f32 %v343, %v440
        %v442 = vpop.f32.mrb[0].mxu0
        %v443 = vadd.f32 %v347, %v442
        %444 = vmatprep.mubr.f32.mxu0 0.0
        %445 = vmatmul.mubr.f32.gmra.mrb[0].mxu0 %v279
        %v446 = vpop.f32.mrb[0].mxu0
        %v447 = vadd.f32 %v343, %v446
        %v448 = vpop.f32.mrb[0].mxu0
        %v449 = vadd.f32 %v347, %v448
        %450 = vmatprep.mubr.f32.mxu0 0.0
        %451 = vmatmul.mubr.f32.gmra.mrb[0].mxu0 %v280
        %v452 = vpop.f32.mrb[0].mxu0
        %v453 = vadd.f32 %v343, %v452
        %v454 = vpop.f32.mrb[0].mxu0
        %v455 = vadd.f32 %v347, %v454
        %456 = vmatprep.mubr.f32.mxu0 0.0
        %457 = vmatmul.mubr.f32.gmra.mrb[0].mxu0 %v281
        %v458 = vpop.f32.mrb[0].mxu0
        %v459 = vadd.f32 %v343, %v458
        %v460 = vpop.f32.mrb[0].mxu0
        %v461 = vadd.f32 %v347, %v460
        %462 = vmatprep.mubr.f32.mxu0 0.0
        %463 = vmatmul.mubr.f32.gmra.mrb[0].mxu0 %v282
        %v464 = vpop.f32.mrb[0].mxu0
        %v465 = vadd.f32 %v343, %v464
        %v466 = vpop.f32.mrb[0].mxu0
        %v467 = vadd.f32 %v347, %v466
        %468 = vmatprep.mubr.f32.mxu0 0.0
        %469 = vmatmul.mubr.f32.gmra.mrb[0].mxu0 %v283
        %v470 = vpop.f32.mrb[0].mxu0
        %v471 = vadd.f32 %v343, %v470
        %v472 = vpop.f32.mrb[0].mxu0
        %v473 = vadd.f32 %v347, %v472
        %474 = vmatprep.mubr.f32.mxu0 0.0
        %475 = vmatmul.mubr.f32.gmra.mrb[0].mxu0 %v284
        %v476 = vpop.f32.mrb[0].mxu0
        %v477 = vadd.f32 %v343, %v476
        %v478 = vpop.f32.mrb[0].mxu0
        %v479 = vadd.f32 %v347, %v478
        %480 = vmatprep.mubr.f32.mxu0 0.0
        %481 = vmatmul.mubr.f32.gmra.mrb[0].mxu0 %v285
        %v482 = vpop.f32.mrb[0].mxu0
        %v483 = vadd.f32 %v343, %v482
        %v484 = vpop.f32.mrb[0].mxu0
        %v485 = vadd.f32 %v347, %v484
        %486 = vmatprep.mubr.f32.mxu0 0.0
        %487 = vmatmul.mubr.f32.gmra.mrb[0].mxu0 %v286
        %v488 = vpop.f32.mrb[0].mxu0
        %v489 = vadd.f32 %v343, %v488
        %v490 = vpop.f32.mrb[0].mxu0
        %v491 = vadd.f32 %v347, %v490
        %492 = vmatprep.mubr.f32.mxu0 0.0
        %493 = vmatmul.mubr.f32.gmra.mrb[0].mxu0 %v287
        %v494 = vpop.f32.mrb[0].mxu0
        %v495 = vadd.f32 %v343, %v494
        %v496 = vpop.f32.mrb[0].mxu0
        %v497 = vadd.f32 %v347, %v496
        %498 = vmatprep.mubr.f32.mxu0 0.0
        %499 = vmatmul.mubr.f32.gmra.mrb[0].mxu0 %v288
        %v500 = vpop.f32.mrb[0].mxu0
        %v501 = vadd.f32 %v343, %v500
        %v502 = vpop.f32.mrb[0].mxu0
        %v503 = vadd.f32 %v347, %v502
        %504 = vmatprep.mubr.f32.mxu0 0.0
        %505 = vmatmul.mubr.f32.gmra.mrb[0].mxu0 %v289
        %v506 = vpop.f32.mrb[0].mxu0
        %v507 = vadd.f32 %v343, %v506
        %v508 = vpop.f32.mrb[0].mxu0
        %v509 = vadd.f32 %v347, %v508
        %510 = vmatprep.mubr.f32.mxu0 0.0
        %511 = vmatmul.mubr.f32.gmra.mrb[0].mxu0 %v290
        %v512 = vpop.f32.mrb[0].mxu0
        %v513 = vadd.f32 %v343, %v512
        %v514 = vpop.f32.mrb[0].mxu0
        %v515 = vadd.f32 %v347, %v514
        %516 = vmatprep.mubr.f32.mxu0 0.0
        %517 = vmatmul.mubr.f32.gmra.mrb[0].mxu0 %v291
        %v518 = vpop.f32.mrb[0].mxu0
        %v519 = vadd.f32 %v343, %v518
        %v520 = vpop.f32.mrb[0].mxu0
        %v521 = vadd.f32 %v347, %v520
        %522 = vmatprep.mubr.f32.mxu0 0.0
        %523 = vmatmul.mubr.f32.gmra.mrb[0].mxu0 %v292
        %v524 = vpop.f32.mrb[0].mxu0
        %v525 = vadd.f32 %v343, %v524
        %v526 = vpop.f32.mrb[0].mxu0
        %v527 = vadd.f32 %v347, %v526
        %528 = vmatprep.mubr.f32.mxu0 0.0
        %529 = vmatmul.mubr.f32.gmra.mrb[0].mxu0 %v293
        %v530 = vpop.f32.mrb[0].mxu0
        %v531 = vadd.f32 %v343, %v530
        %v532 = vpop.f32.mrb[0].mxu0
        %v533 = vadd.f32 %v347, %v532
        %534 = vmatprep.mubr.f32.mxu0 0.0
        %535 = vmatmul.mubr.f32.gmra.mrb[0].mxu0 %v294
        %v536 = vpop.f32.mrb[0].mxu0
        %v537 = vadd.f32 %v343, %v536
        %v538 = vpop.f32.mrb[0].mxu0
        %v539 = vadd.f32 %v347, %v538
        %540 = vmatprep.mubr.f32.mxu0 0.0
        %541 = vmatmul.mubr.f32.gmra.mrb[0].mxu0 %v295
        %v542 = vpop.f32.mrb[0].mxu0
        %v543 = vadd.f32 %v343, %v542
        %v544 = vpop.f32.mrb[0].mxu0
        %v545 = vadd.f32 %v347, %v544
        %546 = vmatprep.mubr.f32.mxu0 0.0
        %547 = vmatmul.mubr.f32.gmra.mrb[0].mxu0 %v296
        %v548 = vpop.f32.mrb[0].mxu0
        %v549 = vadd.f32 %v343, %v548
        %v550 = vpop.f32.mrb[0].mxu0
        %v551 = vadd.f32 %v347, %v550
        %552 = vmatprep.mubr.f32.mxu0 0.0
        %553 = vmatmul.mubr.f32.gmra.mrb[0].mxu0 %v297
        %v554 = vpop.f32.mrb[0].mxu0
        %v555 = vadd.f32 %v343, %v554
        %v556 = vpop.f32.mrb[0].mxu0
        %v557 = vadd.f32 %v347, %v556
        %558 = vmatprep.mubr.f32.mxu0 0.0
        %559 = vmatmul.mubr.f32.gmra.mrb[0].mxu0 %v298
        %v560 = vpop.f32.mrb[0].mxu0
        %v561 = vadd.f32 %v343, %v560
        %v562 = vpop.f32.mrb[0].mxu0
        %v563 = vadd.f32 %v347, %v562
        %564 = vmatprep.mubr.f32.mxu0 0.0
        %565 = vmatmul.mubr.f32.gmra.mrb[0].mxu0 %v299
        %v566 = vpop.f32.mrb[0].mxu0
        %v567 = vadd.f32 %v343, %v566
        %v568 = vpop.f32.mrb[0].mxu0
        %v569 = vadd.f32 %v347, %v568
        %570 = vmatprep.mubr.f32.mxu0 0.0
        %571 = vmatmul.mubr.f32.gmra.mrb[0].mxu0 %v300
        %v572 = vpop.f32.mrb[0].mxu0
        %v573 = vadd.f32 %v343, %v572
        %v574 = vpop.f32.mrb[0].mxu0
        %v575 = vadd.f32 %v347, %v574
        %576 = vmatprep.mubr.f32.mxu0 0.0
        %577 = vmatmul.mubr.f32.gmra.mrb[0].mxu0 %v301
        %v578 = vpop.f32.mrb[0].mxu0
        %v579 = vadd.f32 %v343, %v578
        %v580 = vpop.f32.mrb[0].mxu0
        %v581 = vadd.f32 %v347, %v580
        %582 = vmatprep.mubr.f32.mxu0 0.0
        %583 = vmatmul.mubr.f32.gmra.mrb[0].mxu0 %v302
        %v584 = vpop.f32.mrb[0].mxu0
        %v585 = vadd.f32 %v343, %v584
        %v586 = vpop.f32.mrb[0].mxu0
        %v587 = vadd.f32 %v347, %v586
        %588 = vmatprep.mubr.f32.mxu0 0.0
        %589 = vmatmul.mubr.f32.gmra.mrb[0].mxu0 %v303
        %v590 = vpop.f32.mrb[0].mxu0
        %v591 = vadd.f32 %v343, %v590
        %v592 = vpop.f32.mrb[0].mxu0
        %v593 = vadd.f32 %v347, %v592
        %594 = vmatprep.mubr.f32.mxu0 0.0
        %595 = vmatmul.mubr.f32.gmra.mrb[0].mxu0 %v304
        %v596 = vpop.f32.mrb[0].mxu0
        %v597 = vadd.f32 %v343, %v596
        %v598 = vpop.f32.mrb[0].mxu0
        %v599 = vadd.f32 %v347, %v598
        %600 = vmatprep.mubr.f32.mxu0 0.0
        %601 = vmatmul.mubr.f32.gmra.mrb[0].mxu0 %v305
        %v602 = vpop.f32.mrb[0].mxu0
        %v603 = vadd.f32 %v343, %v602
        %v604 = vpop.f32.mrb[0].mxu0
        %v605 = vadd.f32 %v347, %v604
        %606 = vdwg.mxu0
        %v607 = vtanh.pop %v417
        %v608 = vtanh.pop %v423
        %v609 = vtanh.pop %v429
        %v610 = vtanh.pop %v435
        %v611 = vtanh.pop %v441
        %v612 = vtanh.pop %v447
        %v613 = vtanh.pop %v453
        %v614 = vtanh.pop %v459
        %v615 = vtanh.pop %v465
        %v616 = vtanh.pop %v471
        %v617 = vtanh.pop %v477
        %v618 = vtanh.pop %v483
        %v619 = vtanh.pop %v489
        %v620 = vtanh.pop %v495
        %v621 = vtanh.pop %v501
        %v622 = vtanh.pop %v507
        %v623 = vtanh.pop %v513
        %v624 = vtanh.pop %v519
        %v625 = vtanh.pop %v525
        %v626 = vtanh.pop %v531
        %v627 = vtanh.pop %v537
        %v628 = vtanh.pop %v543
        %v629 = vtanh.pop %v549
        %v630 = vtanh.pop %v555
        %v631 = vtanh.pop %v561
        %v632 = vtanh.pop %v567
        %v633 = vtanh.pop %v573
        %v634 = vtanh.pop %v579
        %v635 = vtanh.pop %v585
        %v636 = vtanh.pop %v591
        %v637 = vtanh.pop %v597
        %v638 = vtanh.pop %v603
        %v639 = vxor.u32 %v419, 2147483648
        %v640 = vxor.u32 %v425, 2147483648
        %v641 = vxor.u32 %v431, 2147483648
        %v642 = vxor.u32 %v437, 2147483648
        %v643 = vxor.u32 %v443, 2147483648
        %v644 = vxor.u32 %v449, 2147483648
        %v645 = vxor.u32 %v455, 2147483648
        %v646 = vxor.u32 %v461, 2147483648
        %v647 = vxor.u32 %v467, 2147483648
        %v648 = vxor.u32 %v473, 2147483648
        %v649 = vxor.u32 %v479, 2147483648
        %v650 = vxor.u32 %v485, 2147483648
        %v651 = vxor.u32 %v491, 2147483648
        %v652 = vxor.u32 %v497, 2147483648
        %v653 = vxor.u32 %v503, 2147483648
        %v654 = vxor.u32 %v509, 2147483648
        %v655 = vxor.u32 %v515, 2147483648
        %v656 = vxor.u32 %v521, 2147483648
        %v657 = vxor.u32 %v527, 2147483648
        %v658 = vxor.u32 %v533, 2147483648
        %v659 = vxor.u32 %v539, 2147483648
        %v660 = vxor.u32 %v545, 2147483648
        %v661 = vxor.u32 %v551, 2147483648
        %v662 = vxor.u32 %v557, 2147483648
        %v663 = vxor.u32 %v563, 2147483648
        %v664 = vxor.u32 %v569, 2147483648
        %v665 = vxor.u32 %v575, 2147483648
        %v666 = vxor.u32 %v581, 2147483648
        %v667 = vxor.u32 %v587, 2147483648
        %v668 = vxor.u32 %v593, 2147483648
        %v669 = vxor.u32 %v599, 2147483648
        %v670 = vxor.u32 %v605, 2147483648
        %v671 = vmul.f32 %v639, 1.442695
        %v672 = vpow.pop %v671
        %v673 = vmul.f32 %v640, 1.442695
        %v674 = vpow.pop %v673
        %v675 = vmul.f32 %v641, 1.442695
        %v676 = vpow.pop %v675
        %v677 = vmul.f32 %v642, 1.442695
        %v678 = vpow.pop %v677
        %v679 = vmul.f32 %v643, 1.442695
        %v680 = vpow.pop %v679
        %v681 = vmul.f32 %v644, 1.442695
        %v682 = vpow.pop %v681
        %v683 = vmul.f32 %v645, 1.442695
        %v684 = vpow.pop %v683
        %v685 = vmul.f32 %v646, 1.442695
        %v686 = vpow.pop %v685
        %v687 = vmul.f32 %v647, 1.442695
        %v688 = vpow.pop %v687
        %v689 = vmul.f32 %v648, 1.442695
        %v690 = vpow.pop %v689
        %v691 = vmul.f32 %v649, 1.442695
        %v692 = vpow.pop %v691
        %v693 = vmul.f32 %v650, 1.442695
        %v694 = vpow.pop %v693
        %v695 = vmul.f32 %v651, 1.442695
        %v696 = vpow.pop %v695
        %v697 = vmul.f32 %v652, 1.442695
        %v698 = vpow.pop %v697
        %v699 = vmul.f32 %v653, 1.442695
        %v700 = vpow.pop %v699
        %v701 = vmul.f32 %v654, 1.442695
        %v702 = vpow.pop %v701
        %v703 = vmul.f32 %v655, 1.442695
        %v704 = vpow.pop %v703
        %v705 = vmul.f32 %v656, 1.442695
        %v706 = vpow.pop %v705
        %v707 = vmul.f32 %v657, 1.442695
        %v708 = vpow.pop %v707
        %v709 = vmul.f32 %v658, 1.442695
        %v710 = vpow.pop %v709
        %v711 = vmul.f32 %v659, 1.442695
        %v712 = vpow.pop %v711
        %v713 = vmul.f32 %v660, 1.442695
        %v714 = vpow.pop %v713
        %v715 = vmul.f32 %v661, 1.442695
        %v716 = vpow.pop %v715
        %v717 = vmul.f32 %v662, 1.442695
        %v718 = vpow.pop %v717
        %v719 = vmul.f32 %v663, 1.442695
        %v720 = vpow.pop %v719
        %v721 = vmul.f32 %v664, 1.442695
        %v722 = vpow.pop %v721
        %v723 = vmul.f32 %v665, 1.442695
        %v724 = vpow.pop %v723
        %v725 = vmul.f32 %v666, 1.442695
        %v726 = vpow.pop %v725
        %v727 = vmul.f32 %v667, 1.442695
        %v728 = vpow.pop %v727
        %v729 = vmul.f32 %v668, 1.442695
        %v730 = vpow.pop %v729
        %v731 = vmul.f32 %v669, 1.442695
        %v732 = vpow.pop %v731
        %v733 = vmul.f32 %v670, 1.442695
        %v734 = vpow.pop %v733
        %v735 = vadd.f32 %v672, 1.0
        %v736 = vadd.f32 %v674, 1.0
        %v737 = vadd.f32 %v676, 1.0
        %v738 = vadd.f32 %v678, 1.0
        %v739 = vadd.f32 %v680, 1.0
        %v740 = vadd.f32 %v682, 1.0
        %v741 = vadd.f32 %v684, 1.0
        %v742 = vadd.f32 %v686, 1.0
        %v743 = vadd.f32 %v688, 1.0
        %v744 = vadd.f32 %v690, 1.0
        %v745 = vadd.f32 %v692, 1.0
        %v746 = vadd.f32 %v694, 1.0
        %v747 = vadd.f32 %v696, 1.0
        %v748 = vadd.f32 %v698, 1.0
        %v749 = vadd.f32 %v700, 1.0
        %v750 = vadd.f32 %v702, 1.0
        %v751 = vadd.f32 %v704, 1.0
        %v752 = vadd.f32 %v706, 1.0
        %v753 = vadd.f32 %v708, 1.0
        %v754 = vadd.f32 %v710, 1.0
        %v755 = vadd.f32 %v712, 1.0
        %v756 = vadd.f32 %v714, 1.0
        %v757 = vadd.f32 %v716, 1.0
        %v758 = vadd.f32 %v718, 1.0
        %v759 = vadd.f32 %v720, 1.0
        %v760 = vadd.f32 %v722, 1.0
        %v761 = vadd.f32 %v724, 1.0
        %v762 = vadd.f32 %v726, 1.0
        %v763 = vadd.f32 %v728, 1.0
        %v764 = vadd.f32 %v730, 1.0
        %v765 = vadd.f32 %v732, 1.0
        %v766 = vadd.f32 %v734, 1.0
        %v767 = vrcp.pop %v735
        %v768 = vmul.f32 1.0, %v767
        %v769 = vrcp.pop %v736
        %v770 = vmul.f32 1.0, %v769
        %v771 = vrcp.pop %v737
        %v772 = vmul.f32 1.0, %v771
        %v773 = vrcp.pop %v738
        %v774 = vmul.f32 1.0, %v773
        %v775 = vrcp.pop %v739
        %v776 = vmul.f32 1.0, %v775
        %v777 = vrcp.pop %v740
        %v778 = vmul.f32 1.0, %v777
        %v779 = vrcp.pop %v741
        %v780 = vmul.f32 1.0, %v779
        %v781 = vrcp.pop %v742
        %v782 = vmul.f32 1.0, %v781
        %v783 = vrcp.pop %v743
        %v784 = vmul.f32 1.0, %v783
        %v785 = vrcp.pop %v744
        %v786 = vmul.f32 1.0, %v785
        %v787 = vrcp.pop %v745
        %v788 = vmul.f32 1.0, %v787
        %v789 = vrcp.pop %v746
        %v790 = vmul.f32 1.0, %v789
        %v791 = vrcp.pop %v747
        %v792 = vmul.f32 1.0, %v791
        %v793 = vrcp.pop %v748
        %v794 = vmul.f32 1.0, %v793
        %v795 = vrcp.pop %v749
        %v796 = vmul.f32 1.0, %v795
        %v797 = vrcp.pop %v750
        %v798 = vmul.f32 1.0, %v797
        %v799 = vrcp.pop %v751
        %v800 = vmul.f32 1.0, %v799
        %v801 = vrcp.pop %v752
        %v802 = vmul.f32 1.0, %v801
        %v803 = vrcp.pop %v753
        %v804 = vmul.f32 1.0, %v803
        %v805 = vrcp.pop %v754
        %v806 = vmul.f32 1.0, %v805
        %v807 = vrcp.pop %v755
        %v808 = vmul.f32 1.0, %v807
        %v809 = vrcp.pop %v756
        %v810 = vmul.f32 1.0, %v809
        %v811 = vrcp.pop %v757
        %v812 = vmul.f32 1.0, %v811
        %v813 = vrcp.pop %v758
        %v814 = vmul.f32 1.0, %v813
        %v815 = vrcp.pop %v759
        %v816 = vmul.f32 1.0, %v815
        %v817 = vrcp.pop %v760
        %v818 = vmul.f32 1.0, %v817
        %v819 = vrcp.pop %v761
        %v820 = vmul.f32 1.0, %v819
        %v821 = vrcp.pop %v762
        %v822 = vmul.f32 1.0, %v821
        %v823 = vrcp.pop %v763
        %v824 = vmul.f32 1.0, %v823
        %v825 = vrcp.pop %v764
        %v826 = vmul.f32 1.0, %v825
        %v827 = vrcp.pop %v765
        %v828 = vmul.f32 1.0, %v827
        %v829 = vrcp.pop %v766
        %v830 = vmul.f32 1.0, %v829
        %v831 = vmul.f32 %v607, %v768
        %v832 = vmul.f32 %v608, %v770
        %v833 = vmul.f32 %v609, %v772
        %v834 = vmul.f32 %v610, %v774
        %v835 = vmul.f32 %v611, %v776
        %v836 = vmul.f32 %v612, %v778
        %v837 = vmul.f32 %v613, %v780
        %v838 = vmul.f32 %v614, %v782
        %v839 = vmul.f32 %v615, %v784
        %v840 = vmul.f32 %v616, %v786
        %v841 = vmul.f32 %v617, %v788
        %v842 = vmul.f32 %v618, %v790
        %v843 = vmul.f32 %v619, %v792
        %v844 = vmul.f32 %v620, %v794
        %v845 = vmul.f32 %v621, %v796
        %v846 = vmul.f32 %v622, %v798
        %v847 = vmul.f32 %v623, %v800
        %v848 = vmul.f32 %v624, %v802
        %v849 = vmul.f32 %v625, %v804
        %v850 = vmul.f32 %v626, %v806
        %v851 = vmul.f32 %v627, %v808
        %v852 = vmul.f32 %v628, %v810
        %v853 = vmul.f32 %v629, %v812
        %v854 = vmul.f32 %v630, %v814
        %v855 = vmul.f32 %v631, %v816
        %v856 = vmul.f32 %v632, %v818
        %v857 = vmul.f32 %v633, %v820
        %v858 = vmul.f32 %v634, %v822
        %v859 = vmul.f32 %v635, %v824
        %v860 = vmul.f32 %v636, %v826
        %v861 = vmul.f32 %v637, %v828
        %v862 = vmul.f32 %v638, %v830
        %v863 = vld [vmem:[#allocation7] sm:$0xff]
        %v864 = vld [vmem:[#allocation7 + $0x8] sm:$0xff]
        %v865 = vld [vmem:[#allocation7 + $0x10] sm:$0xff]
        %v866 = vld [vmem:[#allocation7 + $0x18] sm:$0xff]
        %v867 = vld [vmem:[#allocation7 + $0x20] sm:$0xff]
        %v868 = vld [vmem:[#allocation7 + $0x28] sm:$0xff]
        %v869 = vld [vmem:[#allocation7 + $0x30] sm:$0xff]
        %v870 = vld [vmem:[#allocation7 + $0x38] sm:$0xff]
        %v871 = vld [vmem:[#allocation7 + $0x40] sm:$0xff]
        %v872 = vld [vmem:[#allocation7 + $0x48] sm:$0xff]
        %v873 = vld [vmem:[#allocation7 + $0x50] sm:$0xff]
        %v874 = vld [vmem:[#allocation7 + $0x58] sm:$0xff]
        %v875 = vld [vmem:[#allocation7 + $0x60] sm:$0xff]
        %v876 = vld [vmem:[#allocation7 + $0x68] sm:$0xff]
        %v877 = vld [vmem:[#allocation7 + $0x70] sm:$0xff]
        %v878 = vld [vmem:[#allocation7 + $0x78] sm:$0xff]
        %v879 = vld [vmem:[%s4] sm:$0x1]
        %v881 = vlaneseq
        %v882 = vshrl.u32 %v881, 7
        %v883 = vsub.s32 0, %v882
        %v884 = vrot.slane %v879, %v883
        %886 = vmatprep.subr.mxu0 0.0
        %887 = vmatpush1.msra.mxu0 %v863
        %888 = vmatprep.subr.mxu0 0.0
        %889 = vmatpush1.msra.mxu0 %v864
        %890 = vmatprep.subr.mxu0 0.0
        %891 = vmatpush1.msra.mxu0 %v865
        %892 = vmatprep.subr.mxu0 0.0
        %893 = vmatpush1.msra.mxu0 %v866
        %894 = vmatprep.subr.mxu0 0.0
        %895 = vmatpush1.msra.mxu0 %v867
        %896 = vmatprep.subr.mxu0 0.0
        %897 = vmatpush1.msra.mxu0 %v868
        %898 = vmatprep.subr.mxu0 0.0
        %899 = vmatpush1.msra.mxu0 %v869
        %900 = vmatprep.subr.mxu0 0.0
        %901 = vmatpush1.msra.mxu0 %v870
        %902 = vmatprep.subr.mxu0 0.0
        %903 = vmatpush1.msra.mxu0 %v871
        %904 = vmatprep.subr.mxu0 0.0
        %905 = vmatpush1.msra.mxu0 %v872
        %906 = vmatprep.subr.mxu0 0.0
        %907 = vmatpush1.msra.mxu0 %v873
        %908 = vmatprep.subr.mxu0 0.0
        %909 = vmatpush1.msra.mxu0 %v874
        %910 = vmatprep.subr.mxu0 0.0
        %911 = vmatpush1.msra.mxu0 %v875
        %912 = vmatprep.subr.mxu0 0.0
        %913 = vmatpush1.msra.mxu0 %v876
        %914 = vmatprep.subr.mxu0 0.0
        %915 = vmatpush1.msra.mxu0 %v877
        %916 = vmatprep.subr.mxu0 0.0
        %917 = vmatpush1.msra.mxu0 %v878
        %918 = vmatprep.subr.mxu0 0.0
        %919 = vmatpush1.msra.mxu0 0.0
        %920 = vmatprep.subr.mxu0 0.0
        %921 = vmatpush1.msra.mxu0 0.0
        %922 = vmatprep.subr.mxu0 0.0
        %923 = vmatpush1.msra.mxu0 0.0
        %924 = vmatprep.subr.mxu0 0.0
        %925 = vmatpush1.msra.mxu0 0.0
        %926 = vmatprep.subr.mxu0 0.0
        %927 = vmatpush1.msra.mxu0 0.0
        %928 = vmatprep.subr.mxu0 0.0
        %929 = vmatpush1.msra.mxu0 0.0
        %930 = vmatprep.subr.mxu0 0.0
        %931 = vmatpush1.msra.mxu0 0.0
        %932 = vmatprep.subr.mxu0 0.0
        %933 = vmatpush1.msra.mxu0 0.0
        %934 = vmatprep.subr.mxu0 0.0
        %935 = vmatpush1.msra.mxu0 0.0
        %936 = vmatprep.subr.mxu0 0.0
        %937 = vmatpush1.msra.mxu0 0.0
        %938 = vmatprep.subr.mxu0 0.0
        %939 = vmatpush1.msra.mxu0 0.0
        %940 = vmatprep.subr.mxu0 0.0
        %941 = vmatpush1.msra.mxu0 0.0
        %942 = vmatprep.subr.mxu0 0.0
        %943 = vmatpush1.msra.mxu0 0.0
        %944 = vmatprep.subr.mxu0 0.0
        %945 = vmatpush1.msra.mxu0 0.0
        %946 = vmatprep.subr.mxu0 0.0
        %947 = vmatpush1.msra.mxu0 0.0
        %948 = vmatprep.subr.mxu0 0.0
        %949 = vmatpush1.msra.mxu0 0.0
        %950 = vmatprep.mubr.f32.mxu0 0.0
        %951 = vmatmul.mubr.f32.gmra.mrb[0].mxu0 %v831
        %v952 = vpop.f32.mrb[0].mxu0
        %v953 = vadd.f32 %v884, %v952
        %v954 = vpop.f32.mrb[0].mxu0
        %955 = vmatprep.mubr.f32.mxu0 0.0
        %956 = vmatmul.mubr.f32.gmra.mrb[0].mxu0 %v832
        %v957 = vpop.f32.mrb[0].mxu0
        %v958 = vadd.f32 %v884, %v957
        %v959 = vpop.f32.mrb[0].mxu0
        %960 = vmatprep.mubr.f32.mxu0 0.0
        %961 = vmatmul.mubr.f32.gmra.mrb[0].mxu0 %v833
        %v962 = vpop.f32.mrb[0].mxu0
        %v963 = vadd.f32 %v884, %v962
        %v964 = vpop.f32.mrb[0].mxu0
        %965 = vmatprep.mubr.f32.mxu0 0.0
        %966 = vmatmul.mubr.f32.gmra.mrb[0].mxu0 %v834
        %v967 = vpop.f32.mrb[0].mxu0
        %v968 = vadd.f32 %v884, %v967
        %v969 = vpop.f32.mrb[0].mxu0
        %970 = vmatprep.mubr.f32.mxu0 0.0
        %971 = vmatmul.mubr.f32.gmra.mrb[0].mxu0 %v835
        %v972 = vpop.f32.mrb[0].mxu0
        %v973 = vadd.f32 %v884, %v972
        %v974 = vpop.f32.mrb[0].mxu0
        %975 = vmatprep.mubr.f32.mxu0 0.0
        %976 = vmatmul.mubr.f32.gmra.mrb[0].mxu0 %v836
        %v977 = vpop.f32.mrb[0].mxu0
        %v978 = vadd.f32 %v884, %v977
        %v979 = vpop.f32.mrb[0].mxu0
        %980 = vmatprep.mubr.f32.mxu0 0.0
        %981 = vmatmul.mubr.f32.gmra.mrb[0].mxu0 %v837
        %v982 = vpop.f32.mrb[0].mxu0
        %v983 = vadd.f32 %v884, %v982
        %v984 = vpop.f32.mrb[0].mxu0
        %985 = vmatprep.mubr.f32.mxu0 0.0
        %986 = vmatmul.mubr.f32.gmra.mrb[0].mxu0 %v838
        %v987 = vpop.f32.mrb[0].mxu0
        %v988 = vadd.f32 %v884, %v987
        %v989 = vpop.f32.mrb[0].mxu0
        %990 = vmatprep.mubr.f32.mxu0 0.0
        %991 = vmatmul.mubr.f32.gmra.mrb[0].mxu0 %v839
        %v992 = vpop.f32.mrb[0].mxu0
        %v993 = vadd.f32 %v884, %v992
        %v994 = vpop.f32.mrb[0].mxu0
        %995 = vmatprep.mubr.f32.mxu0 0.0
        %996 = vmatmul.mubr.f32.gmra.mrb[0].mxu0 %v840
        %v997 = vpop.f32.mrb[0].mxu0
        %v998 = vadd.f32 %v884, %v997
        %v999 = vpop.f32.mrb[0].mxu0
        %1000 = vmatprep.mubr.f32.mxu0 0.0
        %1001 = vmatmul.mubr.f32.gmra.mrb[0].mxu0 %v841
        %v1002 = vpop.f32.mrb[0].mxu0
        %v1003 = vadd.f32 %v884, %v1002
        %v1004 = vpop.f32.mrb[0].mxu0
        %1005 = vmatprep.mubr.f32.mxu0 0.0
        %1006 = vmatmul.mubr.f32.gmra.mrb[0].mxu0 %v842
        %v1007 = vpop.f32.mrb[0].mxu0
        %v1008 = vadd.f32 %v884, %v1007
        %v1009 = vpop.f32.mrb[0].mxu0
        %1010 = vmatprep.mubr.f32.mxu0 0.0
        %1011 = vmatmul.mubr.f32.gmra.mrb[0].mxu0 %v843
        %v1012 = vpop.f32.mrb[0].mxu0
        %v1013 = vadd.f32 %v884, %v1012
        %v1014 = vpop.f32.mrb[0].mxu0
        %1015 = vmatprep.mubr.f32.mxu0 0.0
        %1016 = vmatmul.mubr.f32.gmra.mrb[0].mxu0 %v844
        %v1017 = vpop.f32.mrb[0].mxu0
        %v1018 = vadd.f32 %v884, %v1017
        %v1019 = vpop.f32.mrb[0].mxu0
        %1020 = vmatprep.mubr.f32.mxu0 0.0
        %1021 = vmatmul.mubr.f32.gmra.mrb[0].mxu0 %v845
        %v1022 = vpop.f32.mrb[0].mxu0
        %v1023 = vadd.f32 %v884, %v1022
        %v1024 = vpop.f32.mrb[0].mxu0
        %1025 = vmatprep.mubr.f32.mxu0 0.0
        %1026 = vmatmul.mubr.f32.gmra.mrb[0].mxu0 %v846
        %v1027 = vpop.f32.mrb[0].mxu0
        %v1028 = vadd.f32 %v884, %v1027
        %v1029 = vpop.f32.mrb[0].mxu0
        %1030 = vmatprep.mubr.f32.mxu0 0.0
        %1031 = vmatmul.mubr.f32.gmra.mrb[0].mxu0 %v847
        %v1032 = vpop.f32.mrb[0].mxu0
        %v1033 = vadd.f32 %v884, %v1032
        %v1034 = vpop.f32.mrb[0].mxu0
        %1035 = vmatprep.mubr.f32.mxu0 0.0
        %1036 = vmatmul.mubr.f32.gmra.mrb[0].mxu0 %v848
        %v1037 = vpop.f32.mrb[0].mxu0
        %v1038 = vadd.f32 %v884, %v1037
        %v1039 = vpop.f32.mrb[0].mxu0
        %1040 = vmatprep.mubr.f32.mxu0 0.0
        %1041 = vmatmul.mubr.f32.gmra.mrb[0].mxu0 %v849
        %v1042 = vpop.f32.mrb[0].mxu0
        %v1043 = vadd.f32 %v884, %v1042
        %v1044 = vpop.f32.mrb[0].mxu0
        %1045 = vmatprep.mubr.f32.mxu0 0.0
        %1046 = vmatmul.mubr.f32.gmra.mrb[0].mxu0 %v850
        %v1047 = vpop.f32.mrb[0].mxu0
        %v1048 = vadd.f32 %v884, %v1047
        %v1049 = vpop.f32.mrb[0].mxu0
        %1050 = vmatprep.mubr.f32.mxu0 0.0
        %1051 = vmatmul.mubr.f32.gmra.mrb[0].mxu0 %v851
        %v1052 = vpop.f32.mrb[0].mxu0
        %v1053 = vadd.f32 %v884, %v1052
        %v1054 = vpop.f32.mrb[0].mxu0
        %1055 = vmatprep.mubr.f32.mxu0 0.0
        %1056 = vmatmul.mubr.f32.gmra.mrb[0].mxu0 %v852
        %v1057 = vpop.f32.mrb[0].mxu0
        %v1058 = vadd.f32 %v884, %v1057
        %v1059 = vpop.f32.mrb[0].mxu0
        %1060 = vmatprep.mubr.f32.mxu0 0.0
        %1061 = vmatmul.mubr.f32.gmra.mrb[0].mxu0 %v853
        %v1062 = vpop.f32.mrb[0].mxu0
        %v1063 = vadd.f32 %v884, %v1062
        %v1064 = vpop.f32.mrb[0].mxu0
        %1065 = vmatprep.mubr.f32.mxu0 0.0
        %1066 = vmatmul.mubr.f32.gmra.mrb[0].mxu0 %v854
        %v1067 = vpop.f32.mrb[0].mxu0
        %v1068 = vadd.f32 %v884, %v1067
        %v1069 = vpop.f32.mrb[0].mxu0
        %1070 = vmatprep.mubr.f32.mxu0 0.0
        %1071 = vmatmul.mubr.f32.gmra.mrb[0].mxu0 %v855
        %v1072 = vpop.f32.mrb[0].mxu0
        %v1073 = vadd.f32 %v884, %v1072
        %v1074 = vpop.f32.mrb[0].mxu0
        %1075 = vmatprep.mubr.f32.mxu0 0.0
        %1076 = vmatmul.mubr.f32.gmra.mrb[0].mxu0 %v856
        %v1077 = vpop.f32.mrb[0].mxu0
        %v1078 = vadd.f32 %v884, %v1077
        %v1079 = vpop.f32.mrb[0].mxu0
        %1080 = vmatprep.mubr.f32.mxu0 0.0
        %1081 = vmatmul.mubr.f32.gmra.mrb[0].mxu0 %v857
        %v1082 = vpop.f32.mrb[0].mxu0
        %v1083 = vadd.f32 %v884, %v1082
        %v1084 = vpop.f32.mrb[0].mxu0
        %1085 = vmatprep.mubr.f32.mxu0 0.0
        %1086 = vmatmul.mubr.f32.gmra.mrb[0].mxu0 %v858
        %v1087 = vpop.f32.mrb[0].mxu0
        %v1088 = vadd.f32 %v884, %v1087
        %v1089 = vpop.f32.mrb[0].mxu0
        %1090 = vmatprep.mubr.f32.mxu0 0.0
        %1091 = vmatmul.mubr.f32.gmra.mrb[0].mxu0 %v859
        %v1092 = vpop.f32.mrb[0].mxu0
        %v1093 = vadd.f32 %v884, %v1092
        %v1094 = vpop.f32.mrb[0].mxu0
        %1095 = vmatprep.mubr.f32.mxu0 0.0
        %1096 = vmatmul.mubr.f32.gmra.mrb[0].mxu0 %v860
        %v1097 = vpop.f32.mrb[0].mxu0
        %v1098 = vadd.f32 %v884, %v1097
        %v1099 = vpop.f32.mrb[0].mxu0
        %1100 = vmatprep.mubr.f32.mxu0 0.0
        %1101 = vmatmul.mubr.f32.gmra.mrb[0].mxu0 %v861
        %v1102 = vpop.f32.mrb[0].mxu0
        %v1103 = vadd.f32 %v884, %v1102
        %v1104 = vpop.f32.mrb[0].mxu0
        %1105 = vmatprep.mubr.f32.mxu0 0.0
        %1106 = vmatmul.mubr.f32.gmra.mrb[0].mxu0 %v862
        %v1107 = vpop.f32.mrb[0].mxu0
        %v1108 = vadd.f32 %v884, %v1107
        %v1109 = vpop.f32.mrb[0].mxu0
        %1110 = vdwg.mxu0
        %1111 = vst [vmem:[%s271] sm:$0xff] %v953
        %1112 = vst [vmem:[%s271 + $0x8] sm:$0xff] %v958
        %1113 = vst [vmem:[%s271 + $0x10] sm:$0xff] %v963
        %1114 = vst [vmem:[%s271 + $0x18] sm:$0xff] %v968
        %1115 = vst [vmem:[%s271 + $0x20] sm:$0xff] %v973
        %1116 = vst [vmem:[%s271 + $0x28] sm:$0xff] %v978
        %1117 = vst [vmem:[%s271 + $0x30] sm:$0xff] %v983
        %1118 = vst [vmem:[%s271 + $0x38] sm:$0xff] %v988
        %1119 = vst [vmem:[%s271 + $0x40] sm:$0xff] %v993
        %1120 = vst [vmem:[%s271 + $0x48] sm:$0xff] %v998
        %1121 = vst [vmem:[%s271 + $0x50] sm:$0xff] %v1003
        %1122 = vst [vmem:[%s271 + $0x58] sm:$0xff] %v1008
        %1123 = vst [vmem:[%s271 + $0x60] sm:$0xff] %v1013
        %1124 = vst [vmem:[%s271 + $0x68] sm:$0xff] %v1018
        %1125 = vst [vmem:[%s271 + $0x70] sm:$0xff] %v1023
        %1126 = vst [vmem:[%s271 + $0x78] sm:$0xff] %v1028
        %1127 = vst [vmem:[%s271 + $0x80] sm:$0xff] %v1033
        %1128 = vst [vmem:[%s271 + $0x88] sm:$0xff] %v1038
        %1129 = vst [vmem:[%s271 + $0x90] sm:$0xff] %v1043
        %1130 = vst [vmem:[%s271 + $0x98] sm:$0xff] %v1048
        %1131 = vst [vmem:[%s271 + $0xa0] sm:$0xff] %v1053
        %1132 = vst [vmem:[%s271 + $0xa8] sm:$0xff] %v1058
        %1133 = vst [vmem:[%s271 + $0xb0] sm:$0xff] %v1063
        %1134 = vst [vmem:[%s271 + $0xb8] sm:$0xff] %v1068
        %1135 = vst [vmem:[%s271 + $0xc0] sm:$0xff] %v1073
        %1136 = vst [vmem:[%s271 + $0xc8] sm:$0xff] %v1078
        %1137 = vst [vmem:[%s271 + $0xd0] sm:$0xff] %v1083
        %1138 = vst [vmem:[%s271 + $0xd8] sm:$0xff] %v1088
        %1139 = vst [vmem:[%s271 + $0xe0] sm:$0xff] %v1093
        %1140 = vst [vmem:[%s271 + $0xe8] sm:$0xff] %v1098
        %1141 = vst [vmem:[%s271 + $0xf0] sm:$0xff] %v1103
        %1142 = vst [vmem:[%s271 + $0xf8] sm:$0xff] %v1108
        %s1143 = sand.u32 %s141, 1
        %s1144 = scalar_lea.sflag [#allocation4], %s1143
        %s1145 = sand.u32 %s141, 1
        %s1146 = smul.addr %s1145, 256
        %s1147 = scalar_lea.vmem [#allocation8], %s1146
        // Predicated region
        $region53: #{tpu_custom_call.1} parent=39 // pred_check
          %p1148 = pneg %p151
        $region54: #{tpu_custom_call.1} parent=39 // pred_check_branch
          %1150 = sbr.rel (%p1148) target = $region56
        $region55: #{tpu_custom_call.1} parent=39 // pred_region
          %s1151 = smul.u32 32, %s23
          %s1153 = ssub.s32 4096, 4096
          %1154 = vsyncadd %s1144, %s1153
          %s1155 = smul.addr %s1151, 128
          %s1156 = scalar_lea.hbm %s5, %s1155
          %s1157 = sshll.u32 %s1147, 4
          %s1158 = int_to_ptr.vmem [resolvable:$true] %s1157
          %1163 = dma.vmem_to_hbm [thread:$0]  %s1158, 4096, %s1156, %s1144, 128, 128, 8
        $region56: #{tpu_custom_call.1} parent=39 // pred_fallthru
          _
      $region40: #{tpu_custom_call.1} parent=5 // pred_fallthru
        _
      %p1164 = scmp.le.s32.totalorder 2, %s18
      // Predicated region
      $region57: #{tpu_custom_call.1} parent=5 // pred_check
        %p1165 = pneg %p1164
      $region58: #{tpu_custom_call.1} parent=5 // pred_check_branch
        %1167 = sbr.rel (%p1165) target = $region60
      $region59: #{tpu_custom_call.1} parent=5 // pred_region
        %s1168 = ssub.s32 %s18, 2
        // Predicated region
        $region61: #{tpu_custom_call.1} parent=59 // pred_check
          %p1169 = pneg %p157
        $region62: #{tpu_custom_call.1} parent=59 // pred_check_branch
          %1171 = sbr.rel (%p1169) target = $region64
        $region63: #{tpu_custom_call.1} parent=59 // pred_region
          %s1172 = sand.u32 %s142, 1
          %s1173 = scalar_lea.sflag [#allocation4], %s1172
          %s1174 = sand.u32 %s142, 1
          %s1175 = smul.addr %s1174, 256
          %s1176 = scalar_lea.vmem [#allocation8], %s1175
          %1177 = dma.done %s1173, 4096
        $region64: #{tpu_custom_call.1} parent=59 // pred_fallthru
          _
      $region60: #{tpu_custom_call.1} parent=5 // pred_fallthru
        _
    $region6: #{tpu_custom_call.1} parent=1 // loop_footer
      %s22 = sadd.s32 1, %s18
    $region7: #{tpu_custom_call.1} parent=1 // loop_footer_branch
      %17 = sbr.rel target = $region3
    $region8: #{tpu_custom_call.1} parent=1 // loop_exit
      _
    %1178 = vsyncpa [#allocation3], 1
    %s1179 = scalar_lea.sflag [#allocation3], 1
    %1180 = vsyncpa %s1179, 1
    %1181 = vsyncpa [#allocation6], 1
    %1182 = vsyncpa [#allocation4], 1
    %s1183 = scalar_lea.sflag [#allocation4], 1
    %1184 = vsyncpa %s1183, 1

</llo_original>
